<compile_context>
chip_gen: v5e
topology: v5e:2x2
jax: 0.10.0
libtpu: 0.0.40
codegen_flags: <defaults>
</compile_context>

<pallas_src>
import functools
import math

import jax
import jax.numpy as jnp
from jax.experimental import pallas as pl
from jax.experimental.pallas import tpu as pltpu

_SHIFT = math.log(2.0)          # torch.log(torch.tensor(2.0)).item()
_LEAKY_RELU_SLOPE = 0.01        # torch F.leaky_relu default negative_slope
_VPU_ONLY_ACTS = ('relu', 'leaky_relu')


# ----------------------------- math helpers ---------------------------------

def _softplus(x):
    # softplus(x) = max(x, 0) + log1p(exp(-|x|)): single exp, never overflows.
    return jnp.maximum(x, 0.0) + jnp.log1p(jnp.exp(-jnp.abs(x)))


def _elu(x):
    # expm1 of min(x, 0) never overflows; the select picks x on the + side.
    return jnp.where(x > 0, x, jnp.expm1(jnp.minimum(x, 0.0)))


def _sigmoid(x):
    # Numerically stable sigmoid with a single exp.
    t = jnp.exp(-jnp.abs(x))
    return jnp.where(x >= 0, 1.0 / (1.0 + t), t / (1.0 + t))


def _apply_act(x, act, slope):
    if act == 'relu':
        return jnp.maximum(x, 0)
    elif act == 'leaky_relu':
        return jnp.where(x >= 0, x, x * _LEAKY_RELU_SLOPE)
    elif act == 'sp':
        return _softplus(x)
    elif act == 'leaky_sp':
        return _softplus(x) - slope * jnp.maximum(-x, 0.0)
    elif act == 'elu':
        return _elu(x)
    elif act == 'leaky_elu':
        return _elu(x) - slope * jnp.maximum(-x, 0.0)
    elif act == 'ssp':
        return _softplus(x) - _SHIFT
    elif act == 'leaky_ssp':
        return _softplus(x) - slope * jnp.maximum(-x, 0.0) - _SHIFT
    elif act == 'tanh':
        return jnp.tanh(x)
    elif act == 'leaky_tanh':
        return jnp.tanh(x) + slope * x
    elif act == 'swish':
        return x * _sigmoid(x)
    else:
        raise RuntimeError(f'Undefined activation called {act}')


# ------------------------------- kernel --------------------------------------

def _act_kernel(x_ref, o_ref, *, act, slope):
    x = x_ref[...]
    # relu / leaky_relu are pure VPU ops -> keep native dtype; the
    # transcendental paths compute in f32 for accuracy.
    if act not in _VPU_ONLY_ACTS and x.dtype != jnp.float32:
        x = x.astype(jnp.float32)
    o_ref[...] = _apply_act(x, act, slope).astype(o_ref.dtype)


# ------------------------------- wrapper --------------------------------------

def act_pallas(x, act, slope=0.05, *, target_block_bytes=2 << 20, donate=False):
    """Elementwise activation matching torch Act.forward, any input shape."""
    orig_shape = x.shape
    orig_dtype = x.dtype
    n = x.size
    if n == 0:
        return x
    itemsize = jnp.dtype(orig_dtype).itemsize

    # --- choose a lane-dense 2-D layout -------------------------------------
    # Widest lane count (multiple of 128) that divides n exactly -> no padding.
    lanes = 128
    for c in (8192, 4096, 2048, 1024, 512, 256):
        if n % c == 0:
            lanes = c
            break
    rows = pl.cdiv(n, lanes)

    # ~2 MiB blocks: big enough to hide the ~0.35 us/step pipeline overhead
    # (measured 85%+ of HBM roofline), small enough for v7x's 64 MiB VMEM when
    # double-buffered (in + out).
    max_block_rows = max(8, (target_block_bytes // (lanes * itemsize)) // 8 * 8)

    if rows <= max_block_rows:
        # Single block covering the full slab (block_shape == array dims is
        # always legal, no 8-row rounding needed).
        block_rows = rows
        rows_padded = rows
    else:
        block_rows = max_block_rows
        if rows % 8 == 0:
            # Prefer a block row-count that divides `rows` exactly so the
            # wrapper never materializes a padded HBM copy of a large array.
            for cand in range(max_block_rows, max(8, max_block_rows // 4) - 1, -8):
                if rows % cand == 0:
                    block_rows = cand
                    break
        rows_padded = pl.cdiv(rows, block_rows) * block_rows

    n_slab = rows_padded * lanes
    flat = x.reshape(-1)
    if n_slab != n:
        flat = jnp.pad(flat, (0, n_slab - n))     # only for ragged tails
    slab = flat.reshape(rows_padded, lanes)

    num_blocks = rows_padded // block_rows
    block_bytes = block_rows * lanes * itemsize
    # in + out, double-buffered, plus headroom; cap chip-safely (v7x = 64 MiB).
    vmem_limit = int(min(48 << 20, max(16 << 20, 5 * block_bytes)))

    kernel = functools.partial(_act_kernel, act=act, slope=slope)
    out = pl.pallas_call(
        kernel,
        out_shape=jax.ShapeDtypeStruct((rows_padded, lanes), orig_dtype),
        grid=(num_blocks,),
        in_specs=[pl.BlockSpec((block_rows, lanes), lambda i: (i, 0))],
        out_specs=pl.BlockSpec((block_rows, lanes), lambda i: (i, 0)),
        # Optional in-place update (halves HBM traffic) when the caller can
        # destroy the pre-activation tensor.
        input_output_aliases={0: 0} if donate else {},
        compiler_params=pltpu.CompilerParams(
            dimension_semantics=("parallel",),
            vmem_limit_bytes=vmem_limit),
    )(slab)

    if n_slab != n:
        return out.reshape(-1)[:n].reshape(orig_shape)
    return out.reshape(orig_shape)


def act_reference(x, act, slope=0.05):
    """Pure-JAX reference (same math as torch Act)."""
    return _apply_act(x.astype(jnp.float32), act, slope).astype(x.dtype)


if __name__ == "__main__":
    key = jax.random.PRNGKey(0)
    acts = ['relu', 'leaky_relu', 'sp', 'leaky_sp', 'elu', 'leaky_elu',
            'ssp', 'leaky_ssp', 'tanh', 'leaky_tanh', 'swish']

    ok = True

    # Main case: NCHW-like tensor, divides cleanly into a lane-dense slab.
    x = jax.random.normal(key, (2, 4, 16, 16), dtype=jnp.float32)
    for act in acts:
        y = jax.block_until_ready(act_pallas(x, act))
        y_ref = act_reference(x, act)
        if not jnp.allclose(y, y_ref, atol=1e-5, rtol=1e-5):
            ok = False
            print(f"MISMATCH for act={act}: max err "
                  f"{float(jnp.max(jnp.abs(y - y_ref)))}")

    # Ragged case: exercises the tail-padding path.
    x_ragged = jax.random.normal(jax.random.PRNGKey(1), (2, 3, 7),
                                 dtype=jnp.float32)
    for act in ('relu', 'swish', 'ssp'):
        y = jax.block_until_ready(act_pallas(x_ragged, act))
        y_ref = act_reference(x_ragged, act)
        if not jnp.allclose(y, y_ref, atol=1e-5, rtol=1e-5):
            ok = False
            print(f"MISMATCH (ragged) for act={act}: max err "
                  f"{float(jnp.max(jnp.abs(y - y_ref)))}")

    if ok:
        print("KERNEL_OK")
</pallas_src>

<mosaic_0001>
module attributes {stable_mosaic.version = 11 : i64} {
  func.func @_act_kernel(%arg0: i32, %arg1: memref<1x2048xf32, #tpu.memory_space<vmem>>, %arg2: memref<1x2048xf32, #tpu.memory_space<vmem>>) attributes {dimension_semantics = [#tpu.dimension_semantics<parallel>], iteration_bounds = array<i64: 1>, scalar_prefetch = 0 : i64, scratch_operands = 0 : i64, tpu.core_type = #tpu.core_type<tc>, window_params = [{transform_indices = @transform_0, window_bounds = array<i64: 1, 2048>}, {transform_indices = @transform_1, window_bounds = array<i64: 1, 2048>}]} {
    %c0 = arith.constant 0 : index
    %c0_0 = arith.constant 0 : index
    %0 = vector.load %arg1[%c0, %c0_0] : memref<1x2048xf32, #tpu.memory_space<vmem>>, vector<1x2048xf32>
    %cst = arith.constant 0.000000e+00 : f32
    %1 = vector.broadcast %cst : f32 to vector<1x2048xf32>
    %2 = arith.maximumf %0, %1 : vector<1x2048xf32>
    %c0_1 = arith.constant 0 : index
    %c0_2 = arith.constant 0 : index
    %3 = vector.load %arg2[%c0_1, %c0_2] : memref<1x2048xf32, #tpu.memory_space<vmem>>, vector<1x2048xf32>
    tpu.vector_store %arg2[%c0_1, %c0_2], %2 {strides = array<i32>} : memref<1x2048xf32, #tpu.memory_space<vmem>>, vector<1x2048xf32>,
    return
  }
  func.func @transform_0(%arg0: i32) -> (i32, i32) {
    %c0_i32 = arith.constant 0 : i32
    %c0_i32_0 = arith.constant 0 : i32
    return %arg0, %c0_i32 : i32, i32
  }
  func.func @transform_1(%arg0: i32) -> (i32, i32) {
    %c0_i32 = arith.constant 0 : i32
    %c0_i32_0 = arith.constant 0 : i32
    return %arg0, %c0_i32 : i32, i32
  }
}

</mosaic_0001>

<llo_original>
// kernel: tpu_custom_call.1
$region0: #{tpu_custom_call.1}
  #allocation0 [shape = 'u32[]', space=smem, size = 0x4, offset = 0x4, fixed_abs, tag = 'smem constant byte address 0x4 - core index']
  #allocation1 [shape = 'u32[72,128]{1,0:T(1,128)}', space=vmem, size = 0x9000, scoped, tag = 'internal scratch']
  %s0 = inlined_call_operand.hbm [shape: f32[1,2048], index: 0, kind: input, shape index: {}]
  %s1 = inlined_call_operand.hbm [shape: f32[1,2048], index: 1, kind: output, shape index: {}]
  %s2 = sld [smem:[#allocation0]]
  $region18: #{tpu_custom_call.1} parent=0
    _
  %s4 = ssub.s32 1, %s2
  %s5 = scalar_select 0, %s4, %s2
  $region1: #{tpu_custom_call.1} parent=0
    #allocation2 [shape = 'u8[8192]{0}', space=vmem, size = 0x2000, scoped, tag = 'input window, operand 0, single buffered']
    #allocation3 [shape = 's32[1]{0}', space=sflag, size = 0x4, scoped, tag = 'scoped memory for tpu_custom_call.1']
    #allocation4 [shape = 's32[1]{0}', space=sflag, size = 0x4, scoped, tag = 'scoped memory for tpu_custom_call.1']
    #allocation5 [shape = 'u8[8192]{0}', space=vmem, size = 0x2000, scoped, tag = 'output window, operand 0, single buffered']
    %6 = vsyncpa [#allocation3], 0
    %7 = vsyncpa [#allocation4], 0
    // Predicated region
    $region2: #{tpu_custom_call.1} parent=1 // pred_check
      _
    $region3: #{tpu_custom_call.1} parent=1 // pred_check_branch
      %9 = sbr.rel (0) target = $region5
    $region4: #{tpu_custom_call.1} parent=1 // pred_region
      %11 = vsyncadd [#allocation3], 0
      %s13 = sshll.u32 %s0, 4
      %s14 = int_to_ptr.hbm [resolvable:$true] %s13
      %s15 = sshll.u32 [#allocation2], 4
      %s16 = int_to_ptr.vmem [resolvable:$true] %s15
      %18 = dma.hbm_to_vmem [thread:$0]  %s14, 256, %s16, [#allocation3]
    $region5: #{tpu_custom_call.1} parent=1 // pred_fallthru
      _
    // Predicated region
    $region6: #{tpu_custom_call.1} parent=1 // pred_check
      _
    $region7: #{tpu_custom_call.1} parent=1 // pred_check_branch
      %20 = sbr.rel (0) target = $region9
    $region8: #{tpu_custom_call.1} parent=1 // pred_region
      %22 = dma.done [#allocation3], 256
    $region9: #{tpu_custom_call.1} parent=1 // pred_fallthru
      _
    %v23 = vld [vmem:[#allocation2] sm:$0xff]
    %v24 = vld [vmem:[#allocation2 + $0x8] sm:$0xff]
    %v25 = vmax.f32 %v23, 0.0
    %v26 = vmax.f32 %v24, 0.0
    %27 = vst [vmem:[#allocation5] sm:$0xff] %v25
    %28 = vst [vmem:[#allocation5 + $0x8] sm:$0xff] %v26
    // Predicated region
    $region10: #{tpu_custom_call.1} parent=1 // pred_check
      _
    $region11: #{tpu_custom_call.1} parent=1 // pred_check_branch
      %30 = sbr.rel (0) target = $region13
    $region12: #{tpu_custom_call.1} parent=1 // pred_region
      %32 = vsyncadd [#allocation4], 0
      %s34 = sshll.u32 [#allocation5], 4
      %s35 = int_to_ptr.vmem [resolvable:$true] %s34
      %s36 = sshll.u32 %s1, 4
      %s37 = int_to_ptr.hbm [resolvable:$true] %s36
      %39 = dma.vmem_to_hbm [thread:$0]  %s35, 256, %s37, [#allocation4]
    $region13: #{tpu_custom_call.1} parent=1 // pred_fallthru
      _
    // Predicated region
    $region14: #{tpu_custom_call.1} parent=1 // pred_check
      _
    $region15: #{tpu_custom_call.1} parent=1 // pred_check_branch
      %41 = sbr.rel (0) target = $region17
    $region16: #{tpu_custom_call.1} parent=1 // pred_region
      %43 = dma.done [#allocation4], 256
    $region17: #{tpu_custom_call.1} parent=1 // pred_fallthru
      _
    %44 = vsyncpa [#allocation3], 1
    %45 = vsyncpa [#allocation4], 1

</llo_original>
